<compile_context>
chip_gen: v7x
topology: tpu7x:2x2x1
jax: 0.10.0
libtpu: 0.0.40
codegen_flags: <defaults>
</compile_context>

<pallas_src>
import functools

import numpy as np
import jax
import jax.numpy as jnp
from jax.experimental import pallas as pl
from jax.experimental.pallas import tpu as pltpu

N_FILTERS = 64
N_OUTPUTS = 28
# (kernel_size, dilation) for the 7 causal-conv branches
CONV_SPECS = [(3, 1), (7, 1), (14, 7), (28, 14), (56, 28), (84, 42), (112, 56)]
N_BRANCHES = len(CONV_SPECS)
HIDDEN = int(0.3 * N_BRANCHES * N_FILTERS)  # = 134, same as the PyTorch module
BT = 8                                      # batch elements per grid step


def _round_up(x, m):
    return ((x + m - 1) // m) * m


def _effective_taps(k, d, L):
    """Taps j whose causal shift s=(k-1-j)*d can touch real (non-pad) data."""
    # Dropped taps only ever multiply the zero causal padding -> contribute 0.
    return [(j, (k - 1 - j) * d) for j in range(k) if (k - 1 - j) * d <= L - 1]


# ----------------------------------------------------------------------------
# Pallas kernel: 2 matmuls + max-over-time + relu for BT batch elements.
# ----------------------------------------------------------------------------
def _fused_kernel(x_ref, wc_ref, wd_ref, out_ref, *, bt, lp):
    # x_ref : (BT*LP, KP) bf16 im2col slab for BT batch elements
    #         cols [0:K_eff) = shifted taps, col K_eff = 1.0 (bias carrier)
    # wc_ref: (KP, CW)     bf16 block-structured conv weights (+ bias row,
    #                      + carrier column at NC)
    # wd_ref: (CW, OP)     bf16 folded dense0@dense1 weights (+ bias row)
    # out_ref: (BT, OP)    f32  (cols [0:28) hold the real output)

    # Fused 7-branch causal conv (+ bias via carrier column), f32 accumulation.
    a = jnp.dot(x_ref[...], wc_ref[...],
                preferred_element_type=jnp.float32)            # (BT*LP, CW)
    cw = a.shape[-1]

    # max over time, THEN relu (relu is monotone -> exact; one VPU pass on the
    # small reduced tensor instead of the big activation).  Zero-padded time
    # rows / batch rows contribute exactly 0, which the relu floor absorbs.
    h = jnp.maximum(jnp.max(a.reshape(bt, lp, cw), axis=1), 0.0)   # (BT, CW)

    # TODO(synk): Dropout(p=0.05) is identity here (eval-mode forward), which
    # is what makes the dense0/dense1 fold below exact.

    # Folded dense_concat0 @ dense_concat1 (bias via the carrier "1" column).
    y = jnp.dot(h.astype(jnp.bfloat16), wd_ref[...],
                preferred_element_type=jnp.float32)                # (BT, OP)

    out_ref[...] = y


# ----------------------------------------------------------------------------
# Parameter init (PyTorch layouts: conv (F, C, k), Linear (out, in)).
# ----------------------------------------------------------------------------
def init_params(key, n_dyn_fea):
    keys = jax.random.split(key, 2 * N_BRANCHES + 4)
    ki = 0
    convs = []
    for (k, d) in CONV_SPECS:
        w = jax.random.normal(keys[ki], (N_FILTERS, n_dyn_fea, k),
                              jnp.float32) / np.sqrt(n_dyn_fea * k)
        ki += 1
        b = 0.01 * jax.random.normal(keys[ki], (N_FILTERS,), jnp.float32)
        ki += 1
        convs.append((w, b))
    d0w = jax.random.normal(keys[ki], (HIDDEN, N_BRANCHES * N_FILTERS),
                            jnp.float32) / np.sqrt(N_BRANCHES * N_FILTERS)
    ki += 1
    d0b = 0.01 * jax.random.normal(keys[ki], (HIDDEN,), jnp.float32)
    ki += 1
    d1w = jax.random.normal(keys[ki], (N_OUTPUTS, HIDDEN),
                            jnp.float32) / np.sqrt(HIDDEN)
    ki += 1
    d1b = 0.01 * jax.random.normal(keys[ki], (N_OUTPUTS,), jnp.float32)
    return convs, (d0w, d0b, d1w, d1b)


# ----------------------------------------------------------------------------
# One-time host-side weight packing (numpy; NOT on the per-call path).
# ----------------------------------------------------------------------------
def pack_params(convs, dense, n_dyn_fea, L):
    C, F = n_dyn_fea, N_FILTERS
    NC = N_BRANCHES * F                                  # 448 concat channels

    branch_taps = [_effective_taps(k, d, L) for (k, d) in CONV_SPECS]
    shifts = tuple(s for taps in branch_taps for (_, s) in taps)
    K_eff = len(shifts) * C                              # 88 for C=4, L=32

    KP = _round_up(K_eff + 1, 128)                       # +1 bias-carrier col
    CW = _round_up(NC + 1, 128)                          # 512 (+1 carrier col)
    OP = _round_up(N_OUTPUTS, 128)                       # 128

    # Block-structured conv weight (KP, CW); conv biases in row K_eff.
    wc = np.zeros((KP, CW), np.float32)
    row = 0
    for i, ((w, b), taps) in enumerate(zip(convs, branch_taps)):
        w = np.asarray(w)
        for (j, _) in taps:
            wc[row:row + C, i * F:(i + 1) * F] = w[:, :, j].T
            row += C
        wc[K_eff, i * F:(i + 1) * F] = np.asarray(b)     # conv bias via ones col
    wc[K_eff, NC] = 1.0                                  # carrier -> h[:, NC]==1

    # Folded dense weight: y = c @ (d0w.T @ d1w.T) + (d0b @ d1w.T + d1b)
    d0w, d0b, d1w, d1b = [np.asarray(a) for a in dense]
    wd = np.zeros((CW, OP), np.float32)
    wd[:NC, :N_OUTPUTS] = d0w.T @ d1w.T
    wd[NC, :N_OUTPUTS] = d0b @ d1w.T + d1b               # folded bias via carrier

    return (jnp.asarray(wc, jnp.bfloat16),
            jnp.asarray(wd, jnp.bfloat16),
            shifts)


# ----------------------------------------------------------------------------
# Forward: per-call im2col + pallas_call (jitted; weights already packed).
# ----------------------------------------------------------------------------
@functools.partial(jax.jit, static_argnames=("shifts",))
def amane_wavenet_forward(seq_in, wc, wd, *, shifts):
    """seq_in: (B, n_dyn_fea, L) float32 (PyTorch NCL).  Returns (B, 28)."""
    B, C, L = seq_in.shape
    KP, CW = wc.shape
    OP = wd.shape[1]
    n_taps = len(shifts)
    K_eff = n_taps * C
    pad = max(shifts)

    LP = _round_up(L, 16)                    # bf16 sublane alignment
    n_steps = pl.cdiv(B, BT)
    B_pad = n_steps * BT

    # ---- host-side im2col: one lane-dense bf16 slab -------------------------
    x_blc = jnp.transpose(seq_in, (0, 2, 1)).astype(jnp.float32)    # (B, L, C)
    x_cpad = jnp.pad(x_blc, ((0, 0), (pad, 0), (0, 0)))             # causal pad
    cols = [x_cpad[:, pad - s: pad - s + L, :] for s in shifts]     # x[t-s]
    ones = jnp.ones((B, L, 1), jnp.float32)                         # bias carrier
    zpad = jnp.zeros((B, L, KP - K_eff - 1), jnp.float32)
    x_im = jnp.concatenate(cols + [ones, zpad], axis=-1)            # (B, L, KP)
    x_im = jnp.pad(x_im, ((0, B_pad - B), (0, LP - L), (0, 0)))     # (B_pad,LP,KP)
    x_im = x_im.reshape(B_pad * LP, KP).astype(jnp.bfloat16)        # 2-D slab

    kern = functools.partial(_fused_kernel, bt=BT, lp=LP)

    # ---- pallas_call: BT batch elements per step, weights resident ----------
    out = pl.pallas_call(
        kern,
        out_shape=jax.ShapeDtypeStruct((B_pad, OP), jnp.float32),
        grid=(n_steps,),
        in_specs=[
            pl.BlockSpec((BT * LP, KP), lambda b: (b, 0)),
            pl.BlockSpec((KP, CW), lambda b: (0, 0)),
            pl.BlockSpec((CW, OP), lambda b: (0, 0)),
        ],
        out_specs=pl.BlockSpec((BT, OP), lambda b: (b, 0)),
        compiler_params=pltpu.CompilerParams(
            dimension_semantics=("parallel",)),
    )(x_im, wc, wd)

    return out[:B, :N_OUTPUTS]


# ----------------------------------------------------------------------------
# Pure-JAX f32 reference matching the PyTorch forward (eval mode).
# ----------------------------------------------------------------------------
def reference_forward(seq_in, convs, dense):
    hs = []
    for (w, b), (k, d) in zip(convs, CONV_SPECS):
        left = d * (k - 1)
        y = jax.lax.conv_general_dilated(
            seq_in, w, window_strides=(1,), padding=[(left, 0)],
            rhs_dilation=(d,), dimension_numbers=('NCH', 'OIH', 'NCH'),
            preferred_element_type=jnp.float32)
        y = y + b[None, :, None]
        hs.append(jnp.max(jax.nn.relu(y), axis=-1))        # (B, F)
    c = jnp.concatenate(hs, axis=1)                        # (B, 448)
    d0w, d0b, d1w, d1b = dense
    x = c @ d0w.T + d0b
    return x @ d1w.T + d1b


if __name__ == "__main__":
    n_dyn_fea, seq_len = 4, 32   # args.use_days = 32

    key = jax.random.PRNGKey(0)
    k_param, k_in1, k_in2 = jax.random.split(key, 3)
    convs, dense = init_params(k_param, n_dyn_fea)

    # Packed weights built once (hoisted out of the per-call path).
    wc, wd, shifts = pack_params(convs, dense, n_dyn_fea, seq_len)

    # Small-shape test (B=2, single grid step with batch padding).
    seq_in = jax.random.normal(k_in1, (2, n_dyn_fea, seq_len), jnp.float32)
    out = jax.block_until_ready(
        amane_wavenet_forward(seq_in, wc, wd, shifts=shifts))
    ref = jax.block_until_ready(reference_forward(seq_in, convs, dense))
    # Kernel uses bf16 MXU operands with f32 accumulation; reference is pure
    # f32, so allow a bf16-level tolerance.
    np.testing.assert_allclose(np.asarray(out), np.asarray(ref),
                               rtol=2e-2, atol=5e-2)
    assert out.shape == (2, N_OUTPUTS)

    # Larger batch: exercises multiple grid steps (sharded on v7x) + padding.
    seq_in2 = jax.random.normal(k_in2, (18, n_dyn_fea, seq_len), jnp.float32)
    out2 = jax.block_until_ready(
        amane_wavenet_forward(seq_in2, wc, wd, shifts=shifts))
    ref2 = jax.block_until_ready(reference_forward(seq_in2, convs, dense))
    np.testing.assert_allclose(np.asarray(out2), np.asarray(ref2),
                               rtol=2e-2, atol=5e-2)
    assert out2.shape == (18, N_OUTPUTS)

    print("KERNEL_OK")
</pallas_src>

<mosaic_0001>
module attributes {stable_mosaic.version = 11 : i64} {
  func.func @_fused_kernel(%arg0: i32, %arg1: memref<256x128xbf16, #tpu.memory_space<vmem>>, %arg2: memref<128x512xbf16, #tpu.memory_space<vmem>>, %arg3: memref<512x128xbf16, #tpu.memory_space<vmem>>, %arg4: memref<8x128xf32, #tpu.memory_space<vmem>>) attributes {dimension_semantics = [#tpu.dimension_semantics<parallel>], iteration_bounds = array<i64: 1>, scalar_prefetch = 0 : i64, scratch_operands = 0 : i64, tpu.core_type = #tpu.core_type<tc>, window_params = [{transform_indices = @transform_0, window_bounds = array<i64: 256, 128>}, {pipeline_mode = #tpu.pipeline_mode<synchronous>, transform_indices = @transform_1, window_bounds = array<i64: 128, 512>}, {pipeline_mode = #tpu.pipeline_mode<synchronous>, transform_indices = @transform_2, window_bounds = array<i64: 512, 128>}, {transform_indices = @transform_3, window_bounds = array<i64: 8, 128>}]} {
    %c0 = arith.constant 0 : index
    %c0_0 = arith.constant 0 : index
    %0 = vector.load %arg1[%c0, %c0_0] : memref<256x128xbf16, #tpu.memory_space<vmem>>, vector<256x128xbf16>
    %c0_1 = arith.constant 0 : index
    %c0_2 = arith.constant 0 : index
    %1 = vector.load %arg2[%c0_1, %c0_2] : memref<128x512xbf16, #tpu.memory_space<vmem>>, vector<128x512xbf16>
    %cst = arith.constant dense<0.000000e+00> : vector<256x512xf32>
    %2 = tpu.matmul %0, %1, %cst {dimension_numbers = #tpu.dot_dimension_numbers<[1], [0], [0], [1], [0, 0, 1, 1], [], []>} : vector<256x128xbf16>, vector<128x512xbf16>, vector<256x512xf32> -> vector<256x512xf32>
    %3 = vector.shape_cast %2 : vector<256x512xf32> to vector<8x32x512xf32>
    %cst_3 = arith.constant dense<0xFF800000> : vector<8x512xf32>
    %4 = vector.multi_reduction <maximumf>, %3, %cst_3 [1] : vector<8x32x512xf32> to vector<8x512xf32>
    %cst_4 = arith.constant 0.000000e+00 : f32
    %5 = vector.broadcast %cst_4 : f32 to vector<8x512xf32>
    %6 = arith.maximumf %4, %5 : vector<8x512xf32>
    %7 = arith.truncf %6 : vector<8x512xf32> to vector<8x512xbf16>
    %c0_5 = arith.constant 0 : index
    %c0_6 = arith.constant 0 : index
    %8 = vector.load %arg3[%c0_5, %c0_6] : memref<512x128xbf16, #tpu.memory_space<vmem>>, vector<512x128xbf16>
    %cst_7 = arith.constant dense<0.000000e+00> : vector<8x128xf32>
    %9 = tpu.matmul %7, %8, %cst_7 {dimension_numbers = #tpu.dot_dimension_numbers<[1], [0], [0], [1], [0, 0, 1, 1], [], []>} : vector<8x512xbf16>, vector<512x128xbf16>, vector<8x128xf32> -> vector<8x128xf32>
    %c0_8 = arith.constant 0 : index
    %c0_9 = arith.constant 0 : index
    %10 = vector.load %arg4[%c0_8, %c0_9] : memref<8x128xf32, #tpu.memory_space<vmem>>, vector<8x128xf32>
    tpu.vector_store %arg4[%c0_8, %c0_9], %9 {strides = array<i32>} : memref<8x128xf32, #tpu.memory_space<vmem>>, vector<8x128xf32>,
    return
  }
  func.func @transform_0(%arg0: i32) -> (i32, i32) {
    %c0_i32 = arith.constant 0 : i32
    %c0_i32_0 = arith.constant 0 : i32
    return %arg0, %c0_i32 : i32, i32
  }
  func.func @transform_1(%arg0: i32) -> (i32, i32) {
    %c0_i32 = arith.constant 0 : i32
    %c0_i32_0 = arith.constant 0 : i32
    %c0_i32_1 = arith.constant 0 : i32
    return %c0_i32, %c0_i32_0 : i32, i32
  }
  func.func @transform_2(%arg0: i32) -> (i32, i32) {
    %c0_i32 = arith.constant 0 : i32
    %c0_i32_0 = arith.constant 0 : i32
    %c0_i32_1 = arith.constant 0 : i32
    return %c0_i32, %c0_i32_0 : i32, i32
  }
  func.func @transform_3(%arg0: i32) -> (i32, i32) {
    %c0_i32 = arith.constant 0 : i32
    %c0_i32_0 = arith.constant 0 : i32
    return %arg0, %c0_i32 : i32, i32
  }
}

</mosaic_0001>

<llo_original>
// kernel: amane_wavenet_forward.1
$region0: #{amane_wavenet_forward.1}
  #allocation0 [shape = 'u32[]', space=smem, size = 0x4, offset = 0x4, fixed_abs, tag = 'smem constant byte address 0x4 - core index']
  #allocation1 [shape = 'u32[144,128]{1,0:T(1,128)}', space=vmem, size = 0x12000, scoped, tag = 'internal scratch']
  %s0 = inlined_call_operand.vmem [shape: bf16[256,128], index: 0, kind: input, shape index: {}]
  %s1 = inlined_call_operand.vmem [shape: bf16[128,512], index: 1, kind: input, shape index: {}]
  %s2 = inlined_call_operand.vmem [shape: bf16[512,128], index: 2, kind: input, shape index: {}]
  %s3 = inlined_call_operand.vmem [shape: f32[8,128], index: 3, kind: output, shape index: {}]
  %s4 = sld [smem:[#allocation0]]
  $region22: #{amane_wavenet_forward.1} parent=0
    _
  %s6 = ssub.s32 1, %s4
  %s7 = scalar_select 0, %s6, %s4
  // Predicated region
  $region2: #{amane_wavenet_forward.1} parent=0 // pred_check
    _
  $region3: #{amane_wavenet_forward.1} parent=0 // pred_check_branch
    %9 = sbr.rel (0) target = $region5
  $region4: #{amane_wavenet_forward.1} parent=0 // pred_region
    _
  $region5: #{amane_wavenet_forward.1} parent=0 // pred_fallthru
    _
  // Predicated region
  $region6: #{amane_wavenet_forward.1} parent=0 // pred_check
    _
  $region7: #{amane_wavenet_forward.1} parent=0 // pred_check_branch
    %11 = sbr.rel (0) target = $region9
  $region8: #{amane_wavenet_forward.1} parent=0 // pred_region
    _
  $region9: #{amane_wavenet_forward.1} parent=0 // pred_fallthru
    _
  // Predicated region
  $region10: #{amane_wavenet_forward.1} parent=0 // pred_check
    _
  $region11: #{amane_wavenet_forward.1} parent=0 // pred_check_branch
    %13 = sbr.rel (0) target = $region13
  $region12: #{amane_wavenet_forward.1} parent=0 // pred_region
    _
  $region13: #{amane_wavenet_forward.1} parent=0 // pred_fallthru
    _
  %v15 = vld [vmem:[%s0] sm:$0xf]
  %v16 = vld [vmem:[%s0 + $0x4] sm:$0xf]
  %v17 = vld [vmem:[%s0 + $0x8] sm:$0xf]
  %v18 = vld [vmem:[%s0 + $0xc] sm:$0xf]
  %v19 = vld [vmem:[%s0 + $0x10] sm:$0xf]
  %v20 = vld [vmem:[%s0 + $0x14] sm:$0xf]
  %v21 = vld [vmem:[%s0 + $0x18] sm:$0xf]
  %v22 = vld [vmem:[%s0 + $0x1c] sm:$0xf]
  %v23 = vld [vmem:[%s0 + $0x20] sm:$0xf]
  %v24 = vld [vmem:[%s0 + $0x24] sm:$0xf]
  %v25 = vld [vmem:[%s0 + $0x28] sm:$0xf]
  %v26 = vld [vmem:[%s0 + $0x2c] sm:$0xf]
  %v27 = vld [vmem:[%s0 + $0x30] sm:$0xf]
  %v28 = vld [vmem:[%s0 + $0x34] sm:$0xf]
  %v29 = vld [vmem:[%s0 + $0x38] sm:$0xf]
  %v30 = vld [vmem:[%s0 + $0x3c] sm:$0xf]
  %v31 = vld [vmem:[%s0 + $0x40] sm:$0xf]
  %v32 = vld [vmem:[%s0 + $0x44] sm:$0xf]
  %v33 = vld [vmem:[%s0 + $0x48] sm:$0xf]
  %v34 = vld [vmem:[%s0 + $0x4c] sm:$0xf]
  %v35 = vld [vmem:[%s0 + $0x50] sm:$0xf]
  %v36 = vld [vmem:[%s0 + $0x54] sm:$0xf]
  %v37 = vld [vmem:[%s0 + $0x58] sm:$0xf]
  %v38 = vld [vmem:[%s0 + $0x5c] sm:$0xf]
  %v39 = vld [vmem:[%s0 + $0x60] sm:$0xf]
  %v40 = vld [vmem:[%s0 + $0x64] sm:$0xf]
  %v41 = vld [vmem:[%s0 + $0x68] sm:$0xf]
  %v42 = vld [vmem:[%s0 + $0x6c] sm:$0xf]
  %v43 = vld [vmem:[%s0 + $0x70] sm:$0xf]
  %v44 = vld [vmem:[%s0 + $0x74] sm:$0xf]
  %v45 = vld [vmem:[%s0 + $0x78] sm:$0xf]
  %v46 = vld [vmem:[%s0 + $0x7c] sm:$0xf]
  %v47 = vld [vmem:[%s1] sm:$0xff]
  %v48 = vld [vmem:[%s1 + $0x8] sm:$0xff]
  %v49 = vld [vmem:[%s1 + $0x10] sm:$0xff]
  %v50 = vld [vmem:[%s1 + $0x18] sm:$0xff]
  %v51 = vld [vmem:[%s1 + $0x20] sm:$0xff]
  %v52 = vld [vmem:[%s1 + $0x28] sm:$0xff]
  %v53 = vld [vmem:[%s1 + $0x30] sm:$0xff]
  %v54 = vld [vmem:[%s1 + $0x38] sm:$0xff]
  %v55 = vld [vmem:[%s1 + $0x40] sm:$0xff]
  %v56 = vld [vmem:[%s1 + $0x48] sm:$0xff]
  %v57 = vld [vmem:[%s1 + $0x50] sm:$0xff]
  %v58 = vld [vmem:[%s1 + $0x58] sm:$0xff]
  %v59 = vld [vmem:[%s1 + $0x60] sm:$0xff]
  %v60 = vld [vmem:[%s1 + $0x68] sm:$0xff]
  %v61 = vld [vmem:[%s1 + $0x70] sm:$0xff]
  %v62 = vld [vmem:[%s1 + $0x78] sm:$0xff]
  %v63 = vld [vmem:[%s1 + $0x80] sm:$0xff]
  %v64 = vld [vmem:[%s1 + $0x88] sm:$0xff]
  %v65 = vld [vmem:[%s1 + $0x90] sm:$0xff]
  %v66 = vld [vmem:[%s1 + $0x98] sm:$0xff]
  %v67 = vld [vmem:[%s1 + $0xa0] sm:$0xff]
  %v68 = vld [vmem:[%s1 + $0xa8] sm:$0xff]
  %v69 = vld [vmem:[%s1 + $0xb0] sm:$0xff]
  %v70 = vld [vmem:[%s1 + $0xb8] sm:$0xff]
  %v71 = vld [vmem:[%s1 + $0xc0] sm:$0xff]
  %v72 = vld [vmem:[%s1 + $0xc8] sm:$0xff]
  %v73 = vld [vmem:[%s1 + $0xd0] sm:$0xff]
  %v74 = vld [vmem:[%s1 + $0xd8] sm:$0xff]
  %v75 = vld [vmem:[%s1 + $0xe0] sm:$0xff]
  %v76 = vld [vmem:[%s1 + $0xe8] sm:$0xff]
  %v77 = vld [vmem:[%s1 + $0xf0] sm:$0xff]
  %v78 = vld [vmem:[%s1 + $0xf8] sm:$0xff]
  %v111 = vunpack.c.l.b16 %v15
  %v112 = vunpack.c.l.b16 %v16
  %v113 = vunpack.c.l.b16 %v17
  %v114 = vunpack.c.l.b16 %v18
  %v115 = vunpack.c.l.b16 %v19
  %v116 = vunpack.c.l.b16 %v20
  %v117 = vunpack.c.l.b16 %v21
  %v118 = vunpack.c.l.b16 %v22
  %v119 = vunpack.c.l.b16 %v23
  %v120 = vunpack.c.l.b16 %v24
  %v121 = vunpack.c.l.b16 %v25
  %v122 = vunpack.c.l.b16 %v26
  %v123 = vunpack.c.l.b16 %v27
  %v124 = vunpack.c.l.b16 %v28
  %v125 = vunpack.c.l.b16 %v29
  %v126 = vunpack.c.l.b16 %v30
  %v127 = vunpack.c.l.b16 %v31
  %v128 = vunpack.c.l.b16 %v32
  %v129 = vunpack.c.l.b16 %v33
  %v130 = vunpack.c.l.b16 %v34
  %v131 = vunpack.c.l.b16 %v35
  %v132 = vunpack.c.l.b16 %v36
  %v133 = vunpack.c.l.b16 %v37
  %v134 = vunpack.c.l.b16 %v38
  %v135 = vunpack.c.l.b16 %v39
  %v136 = vunpack.c.l.b16 %v40
  %v137 = vunpack.c.l.b16 %v41
  %v138 = vunpack.c.l.b16 %v42
  %v139 = vunpack.c.l.b16 %v43
  %v140 = vunpack.c.l.b16 %v44
  %v141 = vunpack.c.l.b16 %v45
  %v142 = vunpack.c.l.b16 %v46
  %v143 = vpack.c.b16 %v112, %v111
  %v144 = vpack.c.b16 %v114, %v113
  %v145 = vpack.c.b16 %v116, %v115
  %v146 = vpack.c.b16 %v118, %v117
  %v147 = vpack.c.b16 %v120, %v119
  %v148 = vpack.c.b16 %v122, %v121
  %v149 = vpack.c.b16 %v124, %v123
  %v150 = vpack.c.b16 %v126, %v125
  %v151 = vpack.c.b16 %v128, %v127
  %v152 = vpack.c.b16 %v130, %v129
  %v153 = vpack.c.b16 %v132, %v131
  %v154 = vpack.c.b16 %v134, %v133
  %v155 = vpack.c.b16 %v136, %v135
  %v156 = vpack.c.b16 %v138, %v137
  %v157 = vpack.c.b16 %v140, %v139
  %v158 = vpack.c.b16 %v142, %v141
  %v207 = vunpack.c.l.b16 %v47
  %v208 = vunpack.c.h.b16 %v47
  %v209 = vunpack.c.l.b16 %v48
  %v210 = vunpack.c.h.b16 %v48
  %v211 = vunpack.c.l.b16 %v49
  %v212 = vunpack.c.h.b16 %v49
  %v213 = vunpack.c.l.b16 %v50
  %v214 = vunpack.c.h.b16 %v50
  %v215 = vunpack.c.l.b16 %v51
  %v216 = vunpack.c.h.b16 %v51
  %v217 = vunpack.c.l.b16 %v52
  %v218 = vunpack.c.h.b16 %v52
  %v219 = vunpack.c.l.b16 %v53
  %v220 = vunpack.c.h.b16 %v53
  %v221 = vunpack.c.l.b16 %v54
  %v222 = vunpack.c.h.b16 %v54
  %v223 = vunpack.c.l.b16 %v55
  %v224 = vunpack.c.h.b16 %v55
  %v225 = vunpack.c.l.b16 %v56
  %v226 = vunpack.c.h.b16 %v56
  %v227 = vunpack.c.l.b16 %v57
  %v228 = vunpack.c.h.b16 %v57
  %v229 = vunpack.c.l.b16 %v58
  %v230 = vunpack.c.h.b16 %v58
  %v231 = vunpack.c.l.b16 %v59
  %v232 = vunpack.c.h.b16 %v59
  %v233 = vunpack.c.l.b16 %v60
  %v234 = vunpack.c.h.b16 %v60
  %v235 = vunpack.c.l.b16 %v61
  %v236 = vunpack.c.h.b16 %v61
  %v237 = vunpack.c.l.b16 %v62
  %v238 = vunpack.c.h.b16 %v62
  %v239 = vunpack.c.l.b16 %v63
  %v240 = vunpack.c.h.b16 %v63
  %v241 = vunpack.c.l.b16 %v64
  %v242 = vunpack.c.h.b16 %v64
  %v243 = vunpack.c.l.b16 %v65
  %v244 = vunpack.c.h.b16 %v65
  %v245 = vunpack.c.l.b16 %v66
  %v246 = vunpack.c.h.b16 %v66
  %v247 = vunpack.c.l.b16 %v67
  %v248 = vunpack.c.h.b16 %v67
  %v249 = vunpack.c.l.b16 %v68
  %v250 = vunpack.c.h.b16 %v68
  %v251 = vunpack.c.l.b16 %v69
  %v252 = vunpack.c.h.b16 %v69
  %v253 = vunpack.c.l.b16 %v70
  %v254 = vunpack.c.h.b16 %v70
  %v255 = vunpack.c.l.b16 %v71
  %v256 = vunpack.c.h.b16 %v71
  %v257 = vunpack.c.l.b16 %v72
  %v258 = vunpack.c.h.b16 %v72
  %v259 = vunpack.c.l.b16 %v73
  %v260 = vunpack.c.h.b16 %v73
  %v261 = vunpack.c.l.b16 %v74
  %v262 = vunpack.c.h.b16 %v74
  %v263 = vunpack.c.l.b16 %v75
  %v264 = vunpack.c.h.b16 %v75
  %v265 = vunpack.c.l.b16 %v76
  %v266 = vunpack.c.h.b16 %v76
  %v267 = vunpack.c.l.b16 %v77
  %v268 = vunpack.c.h.b16 %v77
  %v269 = vunpack.c.l.b16 %v78
  %v270 = vunpack.c.h.b16 %v78
  %v271 = vpack.c.b16 %v211, %v207
  %v272 = vpack.c.b16 %v212, %v208
  %v273 = vpack.c.b16 %v213, %v209
  %v274 = vpack.c.b16 %v214, %v210
  %v275 = vpack.c.b16 %v219, %v215
  %v276 = vpack.c.b16 %v220, %v216
  %v277 = vpack.c.b16 %v221, %v217
  %v278 = vpack.c.b16 %v222, %v218
  %v279 = vpack.c.b16 %v227, %v223
  %v280 = vpack.c.b16 %v228, %v224
  %v281 = vpack.c.b16 %v229, %v225
  %v282 = vpack.c.b16 %v230, %v226
  %v283 = vpack.c.b16 %v235, %v231
  %v284 = vpack.c.b16 %v236, %v232
  %v285 = vpack.c.b16 %v237, %v233
  %v286 = vpack.c.b16 %v238, %v234
  %v287 = vpack.c.b16 %v243, %v239
  %v288 = vpack.c.b16 %v244, %v240
  %v289 = vpack.c.b16 %v245, %v241
  %v290 = vpack.c.b16 %v246, %v242
  %v291 = vpack.c.b16 %v251, %v247
  %v292 = vpack.c.b16 %v252, %v248
  %v293 = vpack.c.b16 %v253, %v249
  %v294 = vpack.c.b16 %v254, %v250
  %v295 = vpack.c.b16 %v259, %v255
  %v296 = vpack.c.b16 %v260, %v256
  %v297 = vpack.c.b16 %v261, %v257
  %v298 = vpack.c.b16 %v262, %v258
  %v299 = vpack.c.b16 %v267, %v263
  %v300 = vpack.c.b16 %v268, %v264
  %v301 = vpack.c.b16 %v269, %v265
  %v302 = vpack.c.b16 %v270, %v266
  %335 = vmatprep.subr.bf16.mxu0 %v272
  %336 = vmatpush1.bf16.msra.mxu0 %v271
  %337 = vmatprep.subr.bf16.mxu0 %v276
  %338 = vmatpush1.bf16.msra.mxu0 %v275
  %339 = vmatprep.subr.bf16.mxu0 %v280
  %340 = vmatpush1.bf16.msra.mxu0 %v279
  %341 = vmatprep.subr.bf16.mxu0 %v284
  %342 = vmatpush1.bf16.msra.mxu0 %v283
  %343 = vmatprep.subr.bf16.mxu0 %v288
  %344 = vmatpush1.bf16.msra.mxu0 %v287
  %345 = vmatprep.subr.bf16.mxu0 %v292
  %346 = vmatpush1.bf16.msra.mxu0 %v291
  %347 = vmatprep.subr.bf16.mxu0 %v296
  %348 = vmatpush1.bf16.msra.mxu0 %v295
  %349 = vmatprep.subr.bf16.mxu0 %v300
  %350 = vmatpush1.bf16.msra.mxu0 %v299
  %351 = vmatprep.subr.bf16.mxu0 0
  %352 = vmatpush1.bf16.msra.mxu0 0
  %353 = vmatprep.subr.bf16.mxu0 0
  %354 = vmatpush1.bf16.msra.mxu0 0
  %355 = vmatprep.subr.bf16.mxu0 0
  %356 = vmatpush1.bf16.msra.mxu0 0
  %357 = vmatprep.subr.bf16.mxu0 0
  %358 = vmatpush1.bf16.msra.mxu0 0
  %359 = vmatprep.subr.bf16.mxu0 0
  %360 = vmatpush1.bf16.msra.mxu0 0
  %361 = vmatprep.subr.bf16.mxu0 0
  %362 = vmatpush1.bf16.msra.mxu0 0
  %363 = vmatprep.subr.bf16.mxu0 0
  %364 = vmatpush1.bf16.msra.mxu0 0
  %365 = vmatprep.subr.bf16.mxu0 0
  %366 = vmatpush1.bf16.msra.mxu0 0
  %367 = vmatprep.mubr.bf16.mxu0 0
  %368 = vmatmul.mubr.bf16.gmra.mrb[0].mxu0 %v143
  %v369 = vpop.f32.mrb[0].mxu0
  %v370 = vadd.f32 0.0, %v369
  %v371 = vpop.f32.mrb[0].mxu0
  %v372 = vadd.f32 0.0, %v371
  %v373 = vpop.f32.mrb[0].mxu0
  %v374 = vadd.f32 0.0, %v373
  %v375 = vpop.f32.mrb[0].mxu0
  %v376 = vadd.f32 0.0, %v375
  %377 = vmatprep.mubr.bf16.mxu0 0
  %378 = vmatmul.mubr.bf16.gmra.mrb[0].mxu0 %v144
  %v379 = vpop.f32.mrb[0].mxu0
  %v380 = vadd.f32 0.0, %v379
  %v381 = vpop.f32.mrb[0].mxu0
  %v382 = vadd.f32 0.0, %v381
  %v383 = vpop.f32.mrb[0].mxu0
  %v384 = vadd.f32 0.0, %v383
  %v385 = vpop.f32.mrb[0].mxu0
  %v386 = vadd.f32 0.0, %v385
  %387 = vmatprep.mubr.bf16.mxu0 0
  %388 = vmatmul.mubr.bf16.gmra.mrb[0].mxu0 %v145
  %v389 = vpop.f32.mrb[0].mxu0
  %v390 = vadd.f32 0.0, %v389
  %v391 = vpop.f32.mrb[0].mxu0
  %v392 = vadd.f32 0.0, %v391
  %v393 = vpop.f32.mrb[0].mxu0
  %v394 = vadd.f32 0.0, %v393
  %v395 = vpop.f32.mrb[0].mxu0
  %v396 = vadd.f32 0.0, %v395
  %397 = vmatprep.mubr.bf16.mxu0 0
  %398 = vmatmul.mubr.bf16.gmra.mrb[0].mxu0 %v146
  %v399 = vpop.f32.mrb[0].mxu0
  %v400 = vadd.f32 0.0, %v399
  %v401 = vpop.f32.mrb[0].mxu0
  %v402 = vadd.f32 0.0, %v401
  %v403 = vpop.f32.mrb[0].mxu0
  %v404 = vadd.f32 0.0, %v403
  %v405 = vpop.f32.mrb[0].mxu0
  %v406 = vadd.f32 0.0, %v405
  %407 = vmatprep.mubr.bf16.mxu0 0
  %408 = vmatmul.mubr.bf16.gmra.mrb[0].mxu0 %v147
  %v409 = vpop.f32.mrb[0].mxu0
  %v410 = vadd.f32 0.0, %v409
  %v411 = vpop.f32.mrb[0].mxu0
  %v412 = vadd.f32 0.0, %v411
  %v413 = vpop.f32.mrb[0].mxu0
  %v414 = vadd.f32 0.0, %v413
  %v415 = vpop.f32.mrb[0].mxu0
  %v416 = vadd.f32 0.0, %v415
  %417 = vmatprep.mubr.bf16.mxu0 0
  %418 = vmatmul.mubr.bf16.gmra.mrb[0].mxu0 %v148
  %v419 = vpop.f32.mrb[0].mxu0
  %v420 = vadd.f32 0.0, %v419
  %v421 = vpop.f32.mrb[0].mxu0
  %v422 = vadd.f32 0.0, %v421
  %v423 = vpop.f32.mrb[0].mxu0
  %v424 = vadd.f32 0.0, %v423
  %v425 = vpop.f32.mrb[0].mxu0
  %v426 = vadd.f32 0.0, %v425
  %427 = vmatprep.mubr.bf16.mxu0 0
  %428 = vmatmul.mubr.bf16.gmra.mrb[0].mxu0 %v149
  %v429 = vpop.f32.mrb[0].mxu0
  %v430 = vadd.f32 0.0, %v429
  %v431 = vpop.f32.mrb[0].mxu0
  %v432 = vadd.f32 0.0, %v431
  %v433 = vpop.f32.mrb[0].mxu0
  %v434 = vadd.f32 0.0, %v433
  %v435 = vpop.f32.mrb[0].mxu0
  %v436 = vadd.f32 0.0, %v435
  %437 = vmatprep.mubr.bf16.mxu0 0
  %438 = vmatmul.mubr.bf16.gmra.mrb[0].mxu0 %v150
  %v439 = vpop.f32.mrb[0].mxu0
  %v440 = vadd.f32 0.0, %v439
  %v441 = vpop.f32.mrb[0].mxu0
  %v442 = vadd.f32 0.0, %v441
  %v443 = vpop.f32.mrb[0].mxu0
  %v444 = vadd.f32 0.0, %v443
  %v445 = vpop.f32.mrb[0].mxu0
  %v446 = vadd.f32 0.0, %v445
  %447 = vmatprep.mubr.bf16.mxu0 0
  %448 = vmatmul.mubr.bf16.gmra.mrb[0].mxu0 %v151
  %v449 = vpop.f32.mrb[0].mxu0
  %v450 = vadd.f32 0.0, %v449
  %v451 = vpop.f32.mrb[0].mxu0
  %v452 = vadd.f32 0.0, %v451
  %v453 = vpop.f32.mrb[0].mxu0
  %v454 = vadd.f32 0.0, %v453
  %v455 = vpop.f32.mrb[0].mxu0
  %v456 = vadd.f32 0.0, %v455
  %457 = vmatprep.mubr.bf16.mxu0 0
  %458 = vmatmul.mubr.bf16.gmra.mrb[0].mxu0 %v152
  %v459 = vpop.f32.mrb[0].mxu0
  %v460 = vadd.f32 0.0, %v459
  %v461 = vpop.f32.mrb[0].mxu0
  %v462 = vadd.f32 0.0, %v461
  %v463 = vpop.f32.mrb[0].mxu0
  %v464 = vadd.f32 0.0, %v463
  %v465 = vpop.f32.mrb[0].mxu0
  %v466 = vadd.f32 0.0, %v465
  %467 = vmatprep.mubr.bf16.mxu0 0
  %468 = vmatmul.mubr.bf16.gmra.mrb[0].mxu0 %v153
  %v469 = vpop.f32.mrb[0].mxu0
  %v470 = vadd.f32 0.0, %v469
  %v471 = vpop.f32.mrb[0].mxu0
  %v472 = vadd.f32 0.0, %v471
  %v473 = vpop.f32.mrb[0].mxu0
  %v474 = vadd.f32 0.0, %v473
  %v475 = vpop.f32.mrb[0].mxu0
  %v476 = vadd.f32 0.0, %v475
  %477 = vmatprep.mubr.bf16.mxu0 0
  %478 = vmatmul.mubr.bf16.gmra.mrb[0].mxu0 %v154
  %v479 = vpop.f32.mrb[0].mxu0
  %v480 = vadd.f32 0.0, %v479
  %v481 = vpop.f32.mrb[0].mxu0
  %v482 = vadd.f32 0.0, %v481
  %v483 = vpop.f32.mrb[0].mxu0
  %v484 = vadd.f32 0.0, %v483
  %v485 = vpop.f32.mrb[0].mxu0
  %v486 = vadd.f32 0.0, %v485
  %487 = vmatprep.mubr.bf16.mxu0 0
  %488 = vmatmul.mubr.bf16.gmra.mrb[0].mxu0 %v155
  %v489 = vpop.f32.mrb[0].mxu0
  %v490 = vadd.f32 0.0, %v489
  %v491 = vpop.f32.mrb[0].mxu0
  %v492 = vadd.f32 0.0, %v491
  %v493 = vpop.f32.mrb[0].mxu0
  %v494 = vadd.f32 0.0, %v493
  %v495 = vpop.f32.mrb[0].mxu0
  %v496 = vadd.f32 0.0, %v495
  %497 = vmatprep.mubr.bf16.mxu0 0
  %498 = vmatmul.mubr.bf16.gmra.mrb[0].mxu0 %v156
  %v499 = vpop.f32.mrb[0].mxu0
  %v500 = vadd.f32 0.0, %v499
  %v501 = vpop.f32.mrb[0].mxu0
  %v502 = vadd.f32 0.0, %v501
  %v503 = vpop.f32.mrb[0].mxu0
  %v504 = vadd.f32 0.0, %v503
  %v505 = vpop.f32.mrb[0].mxu0
  %v506 = vadd.f32 0.0, %v505
  %507 = vmatprep.mubr.bf16.mxu0 0
  %508 = vmatmul.mubr.bf16.gmra.mrb[0].mxu0 %v157
  %v509 = vpop.f32.mrb[0].mxu0
  %v510 = vadd.f32 0.0, %v509
  %v511 = vpop.f32.mrb[0].mxu0
  %v512 = vadd.f32 0.0, %v511
  %v513 = vpop.f32.mrb[0].mxu0
  %v514 = vadd.f32 0.0, %v513
  %v515 = vpop.f32.mrb[0].mxu0
  %v516 = vadd.f32 0.0, %v515
  %517 = vmatprep.mubr.bf16.mxu0 0
  %518 = vmatmul.mubr.bf16.gmra.mrb[0].mxu0 %v158
  %v519 = vpop.f32.mrb[0].mxu0
  %v520 = vadd.f32 0.0, %v519
  %v521 = vpop.f32.mrb[0].mxu0
  %v522 = vadd.f32 0.0, %v521
  %v523 = vpop.f32.mrb[0].mxu0
  %v524 = vadd.f32 0.0, %v523
  %v525 = vpop.f32.mrb[0].mxu0
  %v526 = vadd.f32 0.0, %v525
  %527 = vdwg.mxu0
  %528 = vmatprep.subr.bf16.mxu0 %v274
  %529 = vmatpush1.bf16.msra.mxu0 %v273
  %530 = vmatprep.subr.bf16.mxu0 %v278
  %531 = vmatpush1.bf16.msra.mxu0 %v277
  %532 = vmatprep.subr.bf16.mxu0 %v282
  %533 = vmatpush1.bf16.msra.mxu0 %v281
  %534 = vmatprep.subr.bf16.mxu0 %v286
  %535 = vmatpush1.bf16.msra.mxu0 %v285
  %536 = vmatprep.subr.bf16.mxu0 %v290
  %537 = vmatpush1.bf16.msra.mxu0 %v289
  %538 = vmatprep.subr.bf16.mxu0 %v294
  %539 = vmatpush1.bf16.msra.mxu0 %v293
  %540 = vmatprep.subr.bf16.mxu0 %v298
  %541 = vmatpush1.bf16.msra.mxu0 %v297
  %542 = vmatprep.subr.bf16.mxu0 %v302
  %543 = vmatpush1.bf16.msra.mxu0 %v301
  %544 = vmatprep.subr.bf16.mxu0 0
  %545 = vmatpush1.bf16.msra.mxu0 0
  %546 = vmatprep.subr.bf16.mxu0 0
  %547 = vmatpush1.bf16.msra.mxu0 0
  %548 = vmatprep.subr.bf16.mxu0 0
  %549 = vmatpush1.bf16.msra.mxu0 0
  %550 = vmatprep.subr.bf16.mxu0 0
  %551 = vmatpush1.bf16.msra.mxu0 0
  %552 = vmatprep.subr.bf16.mxu0 0
  %553 = vmatpush1.bf16.msra.mxu0 0
  %554 = vmatprep.subr.bf16.mxu0 0
  %555 = vmatpush1.bf16.msra.mxu0 0
  %556 = vmatprep.subr.bf16.mxu0 0
  %557 = vmatpush1.bf16.msra.mxu0 0
  %558 = vmatprep.subr.bf16.mxu0 0
  %559 = vmatpush1.bf16.msra.mxu0 0
  %560 = vmatprep.mubr.bf16.mxu0 0
  %561 = vmatmul.mubr.bf16.gmra.mrb[0].mxu0 %v143
  %v562 = vpop.f32.mrb[0].mxu0
  %v563 = vadd.f32 0.0, %v562
  %v564 = vpop.f32.mrb[0].mxu0
  %v565 = vadd.f32 0.0, %v564
  %v566 = vpop.f32.mrb[0].mxu0
  %v567 = vadd.f32 0.0, %v566
  %v568 = vpop.f32.mrb[0].mxu0
  %v569 = vadd.f32 0.0, %v568
  %570 = vmatprep.mubr.bf16.mxu0 0
  %571 = vmatmul.mubr.bf16.gmra.mrb[0].mxu0 %v144
  %v572 = vpop.f32.mrb[0].mxu0
  %v573 = vadd.f32 0.0, %v572
  %v574 = vpop.f32.mrb[0].mxu0
  %v575 = vadd.f32 0.0, %v574
  %v576 = vpop.f32.mrb[0].mxu0
  %v577 = vadd.f32 0.0, %v576
  %v578 = vpop.f32.mrb[0].mxu0
  %v579 = vadd.f32 0.0, %v578
  %580 = vmatprep.mubr.bf16.mxu0 0
  %581 = vmatmul.mubr.bf16.gmra.mrb[0].mxu0 %v145
  %v582 = vpop.f32.mrb[0].mxu0
  %v583 = vadd.f32 0.0, %v582
  %v584 = vpop.f32.mrb[0].mxu0
  %v585 = vadd.f32 0.0, %v584
  %v586 = vpop.f32.mrb[0].mxu0
  %v587 = vadd.f32 0.0, %v586
  %v588 = vpop.f32.mrb[0].mxu0
  %v589 = vadd.f32 0.0, %v588
  %590 = vmatprep.mubr.bf16.mxu0 0
  %591 = vmatmul.mubr.bf16.gmra.mrb[0].mxu0 %v146
  %v592 = vpop.f32.mrb[0].mxu0
  %v593 = vadd.f32 0.0, %v592
  %v594 = vpop.f32.mrb[0].mxu0
  %v595 = vadd.f32 0.0, %v594
  %v596 = vpop.f32.mrb[0].mxu0
  %v597 = vadd.f32 0.0, %v596
  %v598 = vpop.f32.mrb[0].mxu0
  %v599 = vadd.f32 0.0, %v598
  %600 = vmatprep.mubr.bf16.mxu0 0
  %601 = vmatmul.mubr.bf16.gmra.mrb[0].mxu0 %v147
  %v602 = vpop.f32.mrb[0].mxu0
  %v603 = vadd.f32 0.0, %v602
  %v604 = vpop.f32.mrb[0].mxu0
  %v605 = vadd.f32 0.0, %v604
  %v606 = vpop.f32.mrb[0].mxu0
  %v607 = vadd.f32 0.0, %v606
  %v608 = vpop.f32.mrb[0].mxu0
  %v609 = vadd.f32 0.0, %v608
  %610 = vmatprep.mubr.bf16.mxu0 0
  %611 = vmatmul.mubr.bf16.gmra.mrb[0].mxu0 %v148
  %v612 = vpop.f32.mrb[0].mxu0
  %v613 = vadd.f32 0.0, %v612
  %v614 = vpop.f32.mrb[0].mxu0
  %v615 = vadd.f32 0.0, %v614
  %v616 = vpop.f32.mrb[0].mxu0
  %v617 = vadd.f32 0.0, %v616
  %v618 = vpop.f32.mrb[0].mxu0
  %v619 = vadd.f32 0.0, %v618
  %620 = vmatprep.mubr.bf16.mxu0 0
  %621 = vmatmul.mubr.bf16.gmra.mrb[0].mxu0 %v149
  %v622 = vpop.f32.mrb[0].mxu0
  %v623 = vadd.f32 0.0, %v622
  %v624 = vpop.f32.mrb[0].mxu0
  %v625 = vadd.f32 0.0, %v624
  %v626 = vpop.f32.mrb[0].mxu0
  %v627 = vadd.f32 0.0, %v626
  %v628 = vpop.f32.mrb[0].mxu0
  %v629 = vadd.f32 0.0, %v628
  %630 = vmatprep.mubr.bf16.mxu0 0
  %631 = vmatmul.mubr.bf16.gmra.mrb[0].mxu0 %v150
  %v632 = vpop.f32.mrb[0].mxu0
  %v633 = vadd.f32 0.0, %v632
  %v634 = vpop.f32.mrb[0].mxu0
  %v635 = vadd.f32 0.0, %v634
  %v636 = vpop.f32.mrb[0].mxu0
  %v637 = vadd.f32 0.0, %v636
  %v638 = vpop.f32.mrb[0].mxu0
  %v639 = vadd.f32 0.0, %v638
  %640 = vmatprep.mubr.bf16.mxu0 0
  %641 = vmatmul.mubr.bf16.gmra.mrb[0].mxu0 %v151
  %v642 = vpop.f32.mrb[0].mxu0
  %v643 = vadd.f32 0.0, %v642
  %v644 = vpop.f32.mrb[0].mxu0
  %v645 = vadd.f32 0.0, %v644
  %v646 = vpop.f32.mrb[0].mxu0
  %v647 = vadd.f32 0.0, %v646
  %v648 = vpop.f32.mrb[0].mxu0
  %v649 = vadd.f32 0.0, %v648
  %650 = vmatprep.mubr.bf16.mxu0 0
  %651 = vmatmul.mubr.bf16.gmra.mrb[0].mxu0 %v152
  %v652 = vpop.f32.mrb[0].mxu0
  %v653 = vadd.f32 0.0, %v652
  %v654 = vpop.f32.mrb[0].mxu0
  %v655 = vadd.f32 0.0, %v654
  %v656 = vpop.f32.mrb[0].mxu0
  %v657 = vadd.f32 0.0, %v656
  %v658 = vpop.f32.mrb[0].mxu0
  %v659 = vadd.f32 0.0, %v658
  %660 = vmatprep.mubr.bf16.mxu0 0
  %661 = vmatmul.mubr.bf16.gmra.mrb[0].mxu0 %v153
  %v662 = vpop.f32.mrb[0].mxu0
  %v663 = vadd.f32 0.0, %v662
  %v664 = vpop.f32.mrb[0].mxu0
  %v665 = vadd.f32 0.0, %v664
  %v666 = vpop.f32.mrb[0].mxu0
  %v667 = vadd.f32 0.0, %v666
  %v668 = vpop.f32.mrb[0].mxu0
  %v669 = vadd.f32 0.0, %v668
  %670 = vmatprep.mubr.bf16.mxu0 0
  %671 = vmatmul.mubr.bf16.gmra.mrb[0].mxu0 %v154
  %v672 = vpop.f32.mrb[0].mxu0
  %v673 = vadd.f32 0.0, %v672
  %v674 = vpop.f32.mrb[0].mxu0
  %v675 = vadd.f32 0.0, %v674
  %v676 = vpop.f32.mrb[0].mxu0
  %v677 = vadd.f32 0.0, %v676
  %v678 = vpop.f32.mrb[0].mxu0
  %v679 = vadd.f32 0.0, %v678
  %680 = vmatprep.mubr.bf16.mxu0 0
  %681 = vmatmul.mubr.bf16.gmra.mrb[0].mxu0 %v155
  %v682 = vpop.f32.mrb[0].mxu0
  %v683 = vadd.f32 0.0, %v682
  %v684 = vpop.f32.mrb[0].mxu0
  %v685 = vadd.f32 0.0, %v684
  %v686 = vpop.f32.mrb[0].mxu0
  %v687 = vadd.f32 0.0, %v686
  %v688 = vpop.f32.mrb[0].mxu0
  %v689 = vadd.f32 0.0, %v688
  %690 = vmatprep.mubr.bf16.mxu0 0
  %691 = vmatmul.mubr.bf16.gmra.mrb[0].mxu0 %v156
  %v692 = vpop.f32.mrb[0].mxu0
  %v693 = vadd.f32 0.0, %v692
  %v694 = vpop.f32.mrb[0].mxu0
  %v695 = vadd.f32 0.0, %v694
  %v696 = vpop.f32.mrb[0].mxu0
  %v697 = vadd.f32 0.0, %v696
  %v698 = vpop.f32.mrb[0].mxu0
  %v699 = vadd.f32 0.0, %v698
  %700 = vmatprep.mubr.bf16.mxu0 0
  %701 = vmatmul.mubr.bf16.gmra.mrb[0].mxu0 %v157
  %v702 = vpop.f32.mrb[0].mxu0
  %v703 = vadd.f32 0.0, %v702
  %v704 = vpop.f32.mrb[0].mxu0
  %v705 = vadd.f32 0.0, %v704
  %v706 = vpop.f32.mrb[0].mxu0
  %v707 = vadd.f32 0.0, %v706
  %v708 = vpop.f32.mrb[0].mxu0
  %v709 = vadd.f32 0.0, %v708
  %710 = vmatprep.mubr.bf16.mxu0 0
  %711 = vmatmul.mubr.bf16.gmra.mrb[0].mxu0 %v158
  %v712 = vpop.f32.mrb[0].mxu0
  %v713 = vadd.f32 0.0, %v712
  %v714 = vpop.f32.mrb[0].mxu0
  %v715 = vadd.f32 0.0, %v714
  %v716 = vpop.f32.mrb[0].mxu0
  %v717 = vadd.f32 0.0, %v716
  %v718 = vpop.f32.mrb[0].mxu0
  %v719 = vadd.f32 0.0, %v718
  %720 = vdwg.mxu0
  %v721 = vmax.f32 %v370, %v374
  %v722 = vmax.f32 %v721, %v380
  %v723 = vmax.f32 %v722, %v384
  %v724 = vrot.slane %v723, 4
  %v725 = vmax.f32 %v723, %v724
  %v726 = vrot.slane %v725, 2
  %v727 = vmax.f32 %v725, %v726
  %v728 = vrot.slane %v727, 1
  %v729 = vmax.f32 %v727, %v728
  %v730 = vmax.f32 %v372, %v376
  %v731 = vmax.f32 %v730, %v382
  %v732 = vmax.f32 %v731, %v386
  %v733 = vrot.slane %v732, 4
  %v734 = vmax.f32 %v732, %v733
  %v735 = vrot.slane %v734, 2
  %v736 = vmax.f32 %v734, %v735
  %v737 = vrot.slane %v736, 1
  %v738 = vmax.f32 %v736, %v737
  %v739 = vmax.f32 %v563, %v567
  %v740 = vmax.f32 %v739, %v573
  %v741 = vmax.f32 %v740, %v577
  %v742 = vrot.slane %v741, 4
  %v743 = vmax.f32 %v741, %v742
  %v744 = vrot.slane %v743, 2
  %v745 = vmax.f32 %v743, %v744
  %v746 = vrot.slane %v745, 1
  %v747 = vmax.f32 %v745, %v746
  %v748 = vmax.f32 %v565, %v569
  %v749 = vmax.f32 %v748, %v575
  %v750 = vmax.f32 %v749, %v579
  %v751 = vrot.slane %v750, 4
  %v752 = vmax.f32 %v750, %v751
  %v753 = vrot.slane %v752, 2
  %v754 = vmax.f32 %v752, %v753
  %v755 = vrot.slane %v754, 1
  %v756 = vmax.f32 %v754, %v755
  %v757 = vmax.f32 %v390, %v394
  %v758 = vmax.f32 %v757, %v400
  %v759 = vmax.f32 %v758, %v404
  %v760 = vrot.slane %v759, 4
  %v761 = vmax.f32 %v759, %v760
  %v762 = vrot.slane %v761, 2
  %v763 = vmax.f32 %v761, %v762
  %v764 = vrot.slane %v763, 1
  %v765 = vmax.f32 %v763, %v764
  %v766 = vmax.f32 %v392, %v396
  %v767 = vmax.f32 %v766, %v402
  %v768 = vmax.f32 %v767, %v406
  %v769 = vrot.slane %v768, 4
  %v770 = vmax.f32 %v768, %v769
  %v771 = vrot.slane %v770, 2
  %v772 = vmax.f32 %v770, %v771
  %v773 = vrot.slane %v772, 1
  %v774 = vmax.f32 %v772, %v773
  %v775 = vmax.f32 %v583, %v587
  %v776 = vmax.f32 %v775, %v593
  %v777 = vmax.f32 %v776, %v597
  %v778 = vrot.slane %v777, 4
  %v779 = vmax.f32 %v777, %v778
  %v780 = vrot.slane %v779, 2
  %v781 = vmax.f32 %v779, %v780
  %v782 = vrot.slane %v781, 1
  %v783 = vmax.f32 %v781, %v782
  %v784 = vmax.f32 %v585, %v589
  %v785 = vmax.f32 %v784, %v595
  %v786 = vmax.f32 %v785, %v599
  %v787 = vrot.slane %v786, 4
  %v788 = vmax.f32 %v786, %v787
  %v789 = vrot.slane %v788, 2
  %v790 = vmax.f32 %v788, %v789
  %v791 = vrot.slane %v790, 1
  %v792 = vmax.f32 %v790, %v791
  %v793 = vmax.f32 %v410, %v414
  %v794 = vmax.f32 %v793, %v420
  %v795 = vmax.f32 %v794, %v424
  %v796 = vrot.slane %v795, 4
  %v797 = vmax.f32 %v795, %v796
  %v798 = vrot.slane %v797, 2
  %v799 = vmax.f32 %v797, %v798
  %v800 = vrot.slane %v799, 1
  %v801 = vmax.f32 %v799, %v800
  %v802 = vmax.f32 %v412, %v416
  %v803 = vmax.f32 %v802, %v422
  %v804 = vmax.f32 %v803, %v426
  %v805 = vrot.slane %v804, 4
  %v806 = vmax.f32 %v804, %v805
  %v807 = vrot.slane %v806, 2
  %v808 = vmax.f32 %v806, %v807
  %v809 = vrot.slane %v808, 1
  %v810 = vmax.f32 %v808, %v809
  %v811 = vmax.f32 %v603, %v607
  %v812 = vmax.f32 %v811, %v613
  %v813 = vmax.f32 %v812, %v617
  %v814 = vrot.slane %v813, 4
  %v815 = vmax.f32 %v813, %v814
  %v816 = vrot.slane %v815, 2
  %v817 = vmax.f32 %v815, %v816
  %v818 = vrot.slane %v817, 1
  %v819 = vmax.f32 %v817, %v818
  %v820 = vmax.f32 %v605, %v609
  %v821 = vmax.f32 %v820, %v615
  %v822 = vmax.f32 %v821, %v619
  %v823 = vrot.slane %v822, 4
  %v824 = vmax.f32 %v822, %v823
  %v825 = vrot.slane %v824, 2
  %v826 = vmax.f32 %v824, %v825
  %v827 = vrot.slane %v826, 1
  %v828 = vmax.f32 %v826, %v827
  %v829 = vmax.f32 %v430, %v434
  %v830 = vmax.f32 %v829, %v440
  %v831 = vmax.f32 %v830, %v444
  %v832 = vrot.slane %v831, 4
  %v833 = vmax.f32 %v831, %v832
  %v834 = vrot.slane %v833, 2
  %v835 = vmax.f32 %v833, %v834
  %v836 = vrot.slane %v835, 1
  %v837 = vmax.f32 %v835, %v836
  %v838 = vmax.f32 %v432, %v436
  %v839 = vmax.f32 %v838, %v442
  %v840 = vmax.f32 %v839, %v446
  %v841 = vrot.slane %v840, 4
  %v842 = vmax.f32 %v840, %v841
  %v843 = vrot.slane %v842, 2
  %v844 = vmax.f32 %v842, %v843
  %v845 = vrot.slane %v844, 1
  %v846 = vmax.f32 %v844, %v845
  %v847 = vmax.f32 %v623, %v627
  %v848 = vmax.f32 %v847, %v633
  %v849 = vmax.f32 %v848, %v637
  %v850 = vrot.slane %v849, 4
  %v851 = vmax.f32 %v849, %v850
  %v852 = vrot.slane %v851, 2
  %v853 = vmax.f32 %v851, %v852
  %v854 = vrot.slane %v853, 1
  %v855 = vmax.f32 %v853, %v854
  %v856 = vmax.f32 %v625, %v629
  %v857 = vmax.f32 %v856, %v635
  %v858 = vmax.f32 %v857, %v639
  %v859 = vrot.slane %v858, 4
  %v860 = vmax.f32 %v858, %v859
  %v861 = vrot.slane %v860, 2
  %v862 = vmax.f32 %v860, %v861
  %v863 = vrot.slane %v862, 1
  %v864 = vmax.f32 %v862, %v863
  %v865 = vmax.f32 %v450, %v454
  %v866 = vmax.f32 %v865, %v460
  %v867 = vmax.f32 %v866, %v464
  %v868 = vrot.slane %v867, 4
  %v869 = vmax.f32 %v867, %v868
  %v870 = vrot.slane %v869, 2
  %v871 = vmax.f32 %v869, %v870
  %v872 = vrot.slane %v871, 1
  %v873 = vmax.f32 %v871, %v872
  %v874 = vmax.f32 %v452, %v456
  %v875 = vmax.f32 %v874, %v462
  %v876 = vmax.f32 %v875, %v466
  %v877 = vrot.slane %v876, 4
  %v878 = vmax.f32 %v876, %v877
  %v879 = vrot.slane %v878, 2
  %v880 = vmax.f32 %v878, %v879
  %v881 = vrot.slane %v880, 1
  %v882 = vmax.f32 %v880, %v881
  %v883 = vmax.f32 %v643, %v647
  %v884 = vmax.f32 %v883, %v653
  %v885 = vmax.f32 %v884, %v657
  %v886 = vrot.slane %v885, 4
  %v887 = vmax.f32 %v885, %v886
  %v888 = vrot.slane %v887, 2
  %v889 = vmax.f32 %v887, %v888
  %v890 = vrot.slane %v889, 1
  %v891 = vmax.f32 %v889, %v890
  %v892 = vmax.f32 %v645, %v649
  %v893 = vmax.f32 %v892, %v655
  %v894 = vmax.f32 %v893, %v659
  %v895 = vrot.slane %v894, 4
  %v896 = vmax.f32 %v894, %v895
  %v897 = vrot.slane %v896, 2
  %v898 = vmax.f32 %v896, %v897
  %v899 = vrot.slane %v898, 1
  %v900 = vmax.f32 %v898, %v899
  %v901 = vmax.f32 %v470, %v474
  %v902 = vmax.f32 %v901, %v480
  %v903 = vmax.f32 %v902, %v484
  %v904 = vrot.slane %v903, 4
  %v905 = vmax.f32 %v903, %v904
  %v906 = vrot.slane %v905, 2
  %v907 = vmax.f32 %v905, %v906
  %v908 = vrot.slane %v907, 1
  %v909 = vmax.f32 %v907, %v908
  %v910 = vmax.f32 %v472, %v476
  %v911 = vmax.f32 %v910, %v482
  %v912 = vmax.f32 %v911, %v486
  %v913 = vrot.slane %v912, 4
  %v914 = vmax.f32 %v912, %v913
  %v915 = vrot.slane %v914, 2
  %v916 = vmax.f32 %v914, %v915
  %v917 = vrot.slane %v916, 1
  %v918 = vmax.f32 %v916, %v917
  %v919 = vmax.f32 %v663, %v667
  %v920 = vmax.f32 %v919, %v673
  %v921 = vmax.f32 %v920, %v677
  %v922 = vrot.slane %v921, 4
  %v923 = vmax.f32 %v921, %v922
  %v924 = vrot.slane %v923, 2
  %v925 = vmax.f32 %v923, %v924
  %v926 = vrot.slane %v925, 1
  %v927 = vmax.f32 %v925, %v926
  %v928 = vmax.f32 %v665, %v669
  %v929 = vmax.f32 %v928, %v675
  %v930 = vmax.f32 %v929, %v679
  %v931 = vrot.slane %v930, 4
  %v932 = vmax.f32 %v930, %v931
  %v933 = vrot.slane %v932, 2
  %v934 = vmax.f32 %v932, %v933
  %v935 = vrot.slane %v934, 1
  %v936 = vmax.f32 %v934, %v935
  %v937 = vmax.f32 %v490, %v494
  %v938 = vmax.f32 %v937, %v500
  %v939 = vmax.f32 %v938, %v504
  %v940 = vrot.slane %v939, 4
  %v941 = vmax.f32 %v939, %v940
  %v942 = vrot.slane %v941, 2
  %v943 = vmax.f32 %v941, %v942
  %v944 = vrot.slane %v943, 1
  %v945 = vmax.f32 %v943, %v944
  %v946 = vmax.f32 %v492, %v496
  %v947 = vmax.f32 %v946, %v502
  %v948 = vmax.f32 %v947, %v506
  %v949 = vrot.slane %v948, 4
  %v950 = vmax.f32 %v948, %v949
  %v951 = vrot.slane %v950, 2
  %v952 = vmax.f32 %v950, %v951
  %v953 = vrot.slane %v952, 1
  %v954 = vmax.f32 %v952, %v953
  %v955 = vmax.f32 %v683, %v687
  %v956 = vmax.f32 %v955, %v693
  %v957 = vmax.f32 %v956, %v697
  %v958 = vrot.slane %v957, 4
  %v959 = vmax.f32 %v957, %v958
  %v960 = vrot.slane %v959, 2
  %v961 = vmax.f32 %v959, %v960
  %v962 = vrot.slane %v961, 1
  %v963 = vmax.f32 %v961, %v962
  %v964 = vmax.f32 %v685, %v689
  %v965 = vmax.f32 %v964, %v695
  %v966 = vmax.f32 %v965, %v699
  %v967 = vrot.slane %v966, 4
  %v968 = vmax.f32 %v966, %v967
  %v969 = vrot.slane %v968, 2
  %v970 = vmax.f32 %v968, %v969
  %v971 = vrot.slane %v970, 1
  %v972 = vmax.f32 %v970, %v971
  %v973 = vmax.f32 %v510, %v514
  %v974 = vmax.f32 %v973, %v520
  %v975 = vmax.f32 %v974, %v524
  %v976 = vrot.slane %v975, 4
  %v977 = vmax.f32 %v975, %v976
  %v978 = vrot.slane %v977, 2
  %v979 = vmax.f32 %v977, %v978
  %v980 = vrot.slane %v979, 1
  %v981 = vmax.f32 %v979, %v980
  %v982 = vmax.f32 %v512, %v516
  %v983 = vmax.f32 %v982, %v522
  %v984 = vmax.f32 %v983, %v526
  %v985 = vrot.slane %v984, 4
  %v986 = vmax.f32 %v984, %v985
  %v987 = vrot.slane %v986, 2
  %v988 = vmax.f32 %v986, %v987
  %v989 = vrot.slane %v988, 1
  %v990 = vmax.f32 %v988, %v989
  %v991 = vmax.f32 %v703, %v707
  %v992 = vmax.f32 %v991, %v713
  %v993 = vmax.f32 %v992, %v717
  %v994 = vrot.slane %v993, 4
  %v995 = vmax.f32 %v993, %v994
  %v996 = vrot.slane %v995, 2
  %v997 = vmax.f32 %v995, %v996
  %v998 = vrot.slane %v997, 1
  %v999 = vmax.f32 %v997, %v998
  %v1000 = vmax.f32 %v705, %v709
  %v1001 = vmax.f32 %v1000, %v715
  %v1002 = vmax.f32 %v1001, %v719
  %v1003 = vrot.slane %v1002, 4
  %v1004 = vmax.f32 %v1002, %v1003
  %v1005 = vrot.slane %v1004, 2
  %v1006 = vmax.f32 %v1004, %v1005
  %v1007 = vrot.slane %v1006, 1
  %v1008 = vmax.f32 %v1006, %v1007
  %v1009 = vmax.f32 %v729, 0.0
  %v1010 = vmax.f32 %v738, 0.0
  %v1011 = vmax.f32 %v747, 0.0
  %v1012 = vmax.f32 %v756, 0.0
  %v1013 = vmax.f32 %v765, 0.0
  %v1014 = vmax.f32 %v774, 0.0
  %v1015 = vmax.f32 %v783, 0.0
  %v1016 = vmax.f32 %v792, 0.0
  %v1017 = vmax.f32 %v801, 0.0
  %v1018 = vmax.f32 %v810, 0.0
  %v1019 = vmax.f32 %v819, 0.0
  %v1020 = vmax.f32 %v828, 0.0
  %v1021 = vmax.f32 %v837, 0.0
  %v1022 = vmax.f32 %v846, 0.0
  %v1023 = vmax.f32 %v855, 0.0
  %v1024 = vmax.f32 %v864, 0.0
  %v1025 = vmax.f32 %v873, 0.0
  %v1026 = vmax.f32 %v882, 0.0
  %v1027 = vmax.f32 %v891, 0.0
  %v1028 = vmax.f32 %v900, 0.0
  %v1029 = vmax.f32 %v909, 0.0
  %v1030 = vmax.f32 %v918, 0.0
  %v1031 = vmax.f32 %v927, 0.0
  %v1032 = vmax.f32 %v936, 0.0
  %v1033 = vmax.f32 %v945, 0.0
  %v1034 = vmax.f32 %v954, 0.0
  %v1035 = vmax.f32 %v963, 0.0
  %v1036 = vmax.f32 %v972, 0.0
  %v1037 = vmax.f32 %v981, 0.0
  %v1038 = vmax.f32 %v990, 0.0
  %v1039 = vmax.f32 %v999, 0.0
  %v1040 = vmax.f32 %v1008, 0.0
  %v1041 = vpack.c.bf16 %v1009, %v1009
  %v1042 = vpack.c.bf16 %v1010, %v1010
  %v1043 = vpack.c.bf16 %v1011, %v1011
  %v1044 = vpack.c.bf16 %v1012, %v1012
  %v1045 = vpack.c.bf16 %v1013, %v1013
  %v1046 = vpack.c.bf16 %v1014, %v1014
  %v1047 = vpack.c.bf16 %v1015, %v1015
  %v1048 = vpack.c.bf16 %v1016, %v1016
  %v1049 = vpack.c.bf16 %v1017, %v1017
  %v1050 = vpack.c.bf16 %v1018, %v1018
  %v1051 = vpack.c.bf16 %v1019, %v1019
  %v1052 = vpack.c.bf16 %v1020, %v1020
  %v1053 = vpack.c.bf16 %v1021, %v1021
  %v1054 = vpack.c.bf16 %v1022, %v1022
  %v1055 = vpack.c.bf16 %v1023, %v1023
  %v1056 = vpack.c.bf16 %v1024, %v1024
  %v1057 = vpack.c.bf16 %v1025, %v1025
  %v1058 = vpack.c.bf16 %v1026, %v1026
  %v1059 = vpack.c.bf16 %v1027, %v1027
  %v1060 = vpack.c.bf16 %v1028, %v1028
  %v1061 = vpack.c.bf16 %v1029, %v1029
  %v1062 = vpack.c.bf16 %v1030, %v1030
  %v1063 = vpack.c.bf16 %v1031, %v1031
  %v1064 = vpack.c.bf16 %v1032, %v1032
  %v1065 = vpack.c.bf16 %v1033, %v1033
  %v1066 = vpack.c.bf16 %v1034, %v1034
  %v1067 = vpack.c.bf16 %v1035, %v1035
  %v1068 = vpack.c.bf16 %v1036, %v1036
  %v1069 = vpack.c.bf16 %v1037, %v1037
  %v1070 = vpack.c.bf16 %v1038, %v1038
  %v1071 = vpack.c.bf16 %v1039, %v1039
  %v1072 = vpack.c.bf16 %v1040, %v1040
  %v1073 = vld [vmem:[%s2] sm:$0xf]
  %v1074 = vld [vmem:[%s2 + $0x4] sm:$0xf]
  %v1075 = vld [vmem:[%s2 + $0x8] sm:$0xf]
  %v1076 = vld [vmem:[%s2 + $0xc] sm:$0xf]
  %v1077 = vld [vmem:[%s2 + $0x10] sm:$0xf]
  %v1078 = vld [vmem:[%s2 + $0x14] sm:$0xf]
  %v1079 = vld [vmem:[%s2 + $0x18] sm:$0xf]
  %v1080 = vld [vmem:[%s2 + $0x1c] sm:$0xf]
  %v1081 = vld [vmem:[%s2 + $0x20] sm:$0xf]
  %v1082 = vld [vmem:[%s2 + $0x24] sm:$0xf]
  %v1083 = vld [vmem:[%s2 + $0x28] sm:$0xf]
  %v1084 = vld [vmem:[%s2 + $0x2c] sm:$0xf]
  %v1085 = vld [vmem:[%s2 + $0x30] sm:$0xf]
  %v1086 = vld [vmem:[%s2 + $0x34] sm:$0xf]
  %v1087 = vld [vmem:[%s2 + $0x38] sm:$0xf]
  %v1088 = vld [vmem:[%s2 + $0x3c] sm:$0xf]
  %v1089 = vld [vmem:[%s2 + $0x40] sm:$0xf]
  %v1090 = vld [vmem:[%s2 + $0x44] sm:$0xf]
  %v1091 = vld [vmem:[%s2 + $0x48] sm:$0xf]
  %v1092 = vld [vmem:[%s2 + $0x4c] sm:$0xf]
  %v1093 = vld [vmem:[%s2 + $0x50] sm:$0xf]
  %v1094 = vld [vmem:[%s2 + $0x54] sm:$0xf]
  %v1095 = vld [vmem:[%s2 + $0x58] sm:$0xf]
  %v1096 = vld [vmem:[%s2 + $0x5c] sm:$0xf]
  %v1097 = vld [vmem:[%s2 + $0x60] sm:$0xf]
  %v1098 = vld [vmem:[%s2 + $0x64] sm:$0xf]
  %v1099 = vld [vmem:[%s2 + $0x68] sm:$0xf]
  %v1100 = vld [vmem:[%s2 + $0x6c] sm:$0xf]
  %v1101 = vld [vmem:[%s2 + $0x70] sm:$0xf]
  %v1102 = vld [vmem:[%s2 + $0x74] sm:$0xf]
  %v1103 = vld [vmem:[%s2 + $0x78] sm:$0xf]
  %v1104 = vld [vmem:[%s2 + $0x7c] sm:$0xf]
  %v1105 = vld [vmem:[%s2 + $0x80] sm:$0xf]
  %v1106 = vld [vmem:[%s2 + $0x84] sm:$0xf]
  %v1107 = vld [vmem:[%s2 + $0x88] sm:$0xf]
  %v1108 = vld [vmem:[%s2 + $0x8c] sm:$0xf]
  %v1109 = vld [vmem:[%s2 + $0x90] sm:$0xf]
  %v1110 = vld [vmem:[%s2 + $0x94] sm:$0xf]
  %v1111 = vld [vmem:[%s2 + $0x98] sm:$0xf]
  %v1112 = vld [vmem:[%s2 + $0x9c] sm:$0xf]
  %v1113 = vld [vmem:[%s2 + $0xa0] sm:$0xf]
  %v1114 = vld [vmem:[%s2 + $0xa4] sm:$0xf]
  %v1115 = vld [vmem:[%s2 + $0xa8] sm:$0xf]
  %v1116 = vld [vmem:[%s2 + $0xac] sm:$0xf]
  %v1117 = vld [vmem:[%s2 + $0xb0] sm:$0xf]
  %v1118 = vld [vmem:[%s2 + $0xb4] sm:$0xf]
  %v1119 = vld [vmem:[%s2 + $0xb8] sm:$0xf]
  %v1120 = vld [vmem:[%s2 + $0xbc] sm:$0xf]
  %v1121 = vld [vmem:[%s2 + $0xc0] sm:$0xf]
  %v1122 = vld [vmem:[%s2 + $0xc4] sm:$0xf]
  %v1123 = vld [vmem:[%s2 + $0xc8] sm:$0xf]
  %v1124 = vld [vmem:[%s2 + $0xcc] sm:$0xf]
  %v1125 = vld [vmem:[%s2 + $0xd0] sm:$0xf]
  %v1126 = vld [vmem:[%s2 + $0xd4] sm:$0xf]
  %v1127 = vld [vmem:[%s2 + $0xd8] sm:$0xf]
  %v1128 = vld [vmem:[%s2 + $0xdc] sm:$0xf]
  %v1129 = vld [vmem:[%s2 + $0xe0] sm:$0xf]
  %v1130 = vld [vmem:[%s2 + $0xe4] sm:$0xf]
  %v1131 = vld [vmem:[%s2 + $0xe8] sm:$0xf]
  %v1132 = vld [vmem:[%s2 + $0xec] sm:$0xf]
  %v1133 = vld [vmem:[%s2 + $0xf0] sm:$0xf]
  %v1134 = vld [vmem:[%s2 + $0xf4] sm:$0xf]
  %v1135 = vld [vmem:[%s2 + $0xf8] sm:$0xf]
  %v1136 = vld [vmem:[%s2 + $0xfc] sm:$0xf]
  %v1169 = vunpack.c.l.b16 %v1041
  %v1170 = vunpack.c.l.b16 %v1042
  %v1171 = vunpack.c.l.b16 %v1043
  %v1172 = vunpack.c.l.b16 %v1044
  %v1173 = vunpack.c.l.b16 %v1045
  %v1174 = vunpack.c.l.b16 %v1046
  %v1175 = vunpack.c.l.b16 %v1047
  %v1176 = vunpack.c.l.b16 %v1048
  %v1177 = vunpack.c.l.b16 %v1049
  %v1178 = vunpack.c.l.b16 %v1050
  %v1179 = vunpack.c.l.b16 %v1051
  %v1180 = vunpack.c.l.b16 %v1052
  %v1181 = vunpack.c.l.b16 %v1053
  %v1182 = vunpack.c.l.b16 %v1054
  %v1183 = vunpack.c.l.b16 %v1055
  %v1184 = vunpack.c.l.b16 %v1056
  %v1185 = vunpack.c.l.b16 %v1057
  %v1186 = vunpack.c.l.b16 %v1058
  %v1187 = vunpack.c.l.b16 %v1059
  %v1188 = vunpack.c.l.b16 %v1060
  %v1189 = vunpack.c.l.b16 %v1061
  %v1190 = vunpack.c.l.b16 %v1062
  %v1191 = vunpack.c.l.b16 %v1063
  %v1192 = vunpack.c.l.b16 %v1064
  %v1193 = vunpack.c.l.b16 %v1065
  %v1194 = vunpack.c.l.b16 %v1066
  %v1195 = vunpack.c.l.b16 %v1067
  %v1196 = vunpack.c.l.b16 %v1068
  %v1197 = vunpack.c.l.b16 %v1069
  %v1198 = vunpack.c.l.b16 %v1070
  %v1199 = vunpack.c.l.b16 %v1071
  %v1200 = vunpack.c.l.b16 %v1072
  %vm1201 = vcmask 1041409
  %v1202 = vsel %vm1201, %v1173, %v1169
  %vm1203 = vcmask 1042434
  %v1204 = vsel %vm1203, %v1177, %v1202
  %vm1205 = vcmask 1043459
  %v1206 = vsel %vm1205, %v1181, %v1204
  %vm1207 = vcmask 1044484
  %v1208 = vsel %vm1207, %v1185, %v1206
  %vm1209 = vcmask 1045509
  %v1210 = vsel %vm1209, %v1189, %v1208
  %vm1211 = vcmask 1046534
  %v1212 = vsel %vm1211, %v1193, %v1210
  %vm1213 = vcmask 1047559
  %v1214 = vsel %vm1213, %v1197, %v1212
  %v1215 = vsel %vm1201, %v1174, %v1170
  %v1216 = vsel %vm1203, %v1178, %v1215
  %v1217 = vsel %vm1205, %v1182, %v1216
  %v1218 = vsel %vm1207, %v1186, %v1217
  %v1219 = vsel %vm1209, %v1190, %v1218
  %v1220 = vsel %vm1211, %v1194, %v1219
  %v1221 = vsel %vm1213, %v1198, %v1220
  %v1222 = vsel %vm1201, %v1175, %v1171
  %v1223 = vsel %vm1203, %v1179, %v1222
  %v1224 = vsel %vm1205, %v1183, %v1223
  %v1225 = vsel %vm1207, %v1187, %v1224
  %v1226 = vsel %vm1209, %v1191, %v1225
  %v1227 = vsel %vm1211, %v1195, %v1226
  %v1228 = vsel %vm1213, %v1199, %v1227
  %v1229 = vsel %vm1201, %v1176, %v1172
  %v1230 = vsel %vm1203, %v1180, %v1229
  %v1231 = vsel %vm1205, %v1184, %v1230
  %v1232 = vsel %vm1207, %v1188, %v1231
  %v1233 = vsel %vm1209, %v1192, %v1232
  %v1234 = vsel %vm1211, %v1196, %v1233
  %v1235 = vsel %vm1213, %v1200, %v1234
  %v1236 = vpack.c.b16 %v1214, %v1214
  %v1237 = vpack.c.b16 %v1221, %v1221
  %v1238 = vpack.c.b16 %v1228, %v1228
  %v1239 = vpack.c.b16 %v1235, %v1235
  %v1308 = vunpack.c.l.b16 %v1073
  %v1309 = vunpack.c.l.b16 %v1074
  %v1310 = vunpack.c.l.b16 %v1075
  %v1311 = vunpack.c.l.b16 %v1076
  %v1312 = vunpack.c.l.b16 %v1077
  %v1313 = vunpack.c.l.b16 %v1078
  %v1314 = vunpack.c.l.b16 %v1079
  %v1315 = vunpack.c.l.b16 %v1080
  %v1316 = vunpack.c.l.b16 %v1081
  %v1317 = vunpack.c.l.b16 %v1082
  %v1318 = vunpack.c.l.b16 %v1083
  %v1319 = vunpack.c.l.b16 %v1084
  %v1320 = vunpack.c.l.b16 %v1085
  %v1321 = vunpack.c.l.b16 %v1086
  %v1322 = vunpack.c.l.b16 %v1087
  %v1323 = vunpack.c.l.b16 %v1088
  %v1324 = vunpack.c.l.b16 %v1089
  %v1325 = vunpack.c.l.b16 %v1090
  %v1326 = vunpack.c.l.b16 %v1091
  %v1327 = vunpack.c.l.b16 %v1092
  %v1328 = vunpack.c.l.b16 %v1093
  %v1329 = vunpack.c.l.b16 %v1094
  %v1330 = vunpack.c.l.b16 %v1095
  %v1331 = vunpack.c.l.b16 %v1096
  %v1332 = vunpack.c.l.b16 %v1097
  %v1333 = vunpack.c.l.b16 %v1098
  %v1334 = vunpack.c.l.b16 %v1099
  %v1335 = vunpack.c.l.b16 %v1100
  %v1336 = vunpack.c.l.b16 %v1101
  %v1337 = vunpack.c.l.b16 %v1102
  %v1338 = vunpack.c.l.b16 %v1103
  %v1339 = vunpack.c.l.b16 %v1104
  %v1340 = vunpack.c.l.b16 %v1105
  %v1341 = vunpack.c.l.b16 %v1106
  %v1342 = vunpack.c.l.b16 %v1107
  %v1343 = vunpack.c.l.b16 %v1108
  %v1344 = vunpack.c.l.b16 %v1109
  %v1345 = vunpack.c.l.b16 %v1110
  %v1346 = vunpack.c.l.b16 %v1111
  %v1347 = vunpack.c.l.b16 %v1112
  %v1348 = vunpack.c.l.b16 %v1113
  %v1349 = vunpack.c.l.b16 %v1114
  %v1350 = vunpack.c.l.b16 %v1115
  %v1351 = vunpack.c.l.b16 %v1116
  %v1352 = vunpack.c.l.b16 %v1117
  %v1353 = vunpack.c.l.b16 %v1118
  %v1354 = vunpack.c.l.b16 %v1119
  %v1355 = vunpack.c.l.b16 %v1120
  %v1356 = vunpack.c.l.b16 %v1121
  %v1357 = vunpack.c.l.b16 %v1122
  %v1358 = vunpack.c.l.b16 %v1123
  %v1359 = vunpack.c.l.b16 %v1124
  %v1360 = vunpack.c.l.b16 %v1125
  %v1361 = vunpack.c.l.b16 %v1126
  %v1362 = vunpack.c.l.b16 %v1127
  %v1363 = vunpack.c.l.b16 %v1128
  %v1364 = vunpack.c.l.b16 %v1129
  %v1365 = vunpack.c.l.b16 %v1130
  %v1366 = vunpack.c.l.b16 %v1131
  %v1367 = vunpack.c.l.b16 %v1132
  %v1368 = vunpack.c.l.b16 %v1133
  %v1369 = vunpack.c.l.b16 %v1134
  %v1370 = vunpack.c.l.b16 %v1135
  %v1371 = vunpack.c.l.b16 %v1136
  %v1372 = vpack.c.b16 %v1309, %v1308
  %v1373 = vpack.c.b16 %v1311, %v1310
  %v1374 = vpack.c.b16 %v1313, %v1312
  %v1375 = vpack.c.b16 %v1315, %v1314
  %v1376 = vpack.c.b16 %v1317, %v1316
  %v1377 = vpack.c.b16 %v1319, %v1318
  %v1378 = vpack.c.b16 %v1321, %v1320
  %v1379 = vpack.c.b16 %v1323, %v1322
  %v1380 = vpack.c.b16 %v1325, %v1324
  %v1381 = vpack.c.b16 %v1327, %v1326
  %v1382 = vpack.c.b16 %v1329, %v1328
  %v1383 = vpack.c.b16 %v1331, %v1330
  %v1384 = vpack.c.b16 %v1333, %v1332
  %v1385 = vpack.c.b16 %v1335, %v1334
  %v1386 = vpack.c.b16 %v1337, %v1336
  %v1387 = vpack.c.b16 %v1339, %v1338
  %v1388 = vpack.c.b16 %v1341, %v1340
  %v1389 = vpack.c.b16 %v1343, %v1342
  %v1390 = vpack.c.b16 %v1345, %v1344
  %v1391 = vpack.c.b16 %v1347, %v1346
  %v1392 = vpack.c.b16 %v1349, %v1348
  %v1393 = vpack.c.b16 %v1351, %v1350
  %v1394 = vpack.c.b16 %v1353, %v1352
  %v1395 = vpack.c.b16 %v1355, %v1354
  %v1396 = vpack.c.b16 %v1357, %v1356
  %v1397 = vpack.c.b16 %v1359, %v1358
  %v1398 = vpack.c.b16 %v1361, %v1360
  %v1399 = vpack.c.b16 %v1363, %v1362
  %v1400 = vpack.c.b16 %v1365, %v1364
  %v1401 = vpack.c.b16 %v1367, %v1366
  %v1402 = vpack.c.b16 %v1369, %v1368
  %v1403 = vpack.c.b16 %v1371, %v1370
  %1436 = vmatprep.subr.bf16.mxu0 0
  %1437 = vmatpush1.bf16.msra.mxu0 %v1372
  %1438 = vmatprep.subr.bf16.mxu0 0
  %1439 = vmatpush1.bf16.msra.mxu0 %v1373
  %1440 = vmatprep.subr.bf16.mxu0 0
  %1441 = vmatpush1.bf16.msra.mxu0 %v1374
  %1442 = vmatprep.subr.bf16.mxu0 0
  %1443 = vmatpush1.bf16.msra.mxu0 %v1375
  %1444 = vmatprep.subr.bf16.mxu0 0
  %1445 = vmatpush1.bf16.msra.mxu0 %v1376
  %1446 = vmatprep.subr.bf16.mxu0 0
  %1447 = vmatpush1.bf16.msra.mxu0 %v1377
  %1448 = vmatprep.subr.bf16.mxu0 0
  %1449 = vmatpush1.bf16.msra.mxu0 %v1378
  %1450 = vmatprep.subr.bf16.mxu0 0
  %1451 = vmatpush1.bf16.msra.mxu0 %v1379
  %1452 = vmatprep.subr.bf16.mxu0 0
  %1453 = vmatpush1.bf16.msra.mxu0 %v1380
  %1454 = vmatprep.subr.bf16.mxu0 0
  %1455 = vmatpush1.bf16.msra.mxu0 %v1381
  %1456 = vmatprep.subr.bf16.mxu0 0
  %1457 = vmatpush1.bf16.msra.mxu0 %v1382
  %1458 = vmatprep.subr.bf16.mxu0 0
  %1459 = vmatpush1.bf16.msra.mxu0 %v1383
  %1460 = vmatprep.subr.bf16.mxu0 0
  %1461 = vmatpush1.bf16.msra.mxu0 %v1384
  %1462 = vmatprep.subr.bf16.mxu0 0
  %1463 = vmatpush1.bf16.msra.mxu0 %v1385
  %1464 = vmatprep.subr.bf16.mxu0 0
  %1465 = vmatpush1.bf16.msra.mxu0 %v1386
  %1466 = vmatprep.subr.bf16.mxu0 0
  %1467 = vmatpush1.bf16.msra.mxu0 %v1387
  %1468 = vmatprep.mubr.bf16.mxu0 %v1237
  %1469 = vmatmul.mubr.bf16.gmra.mrb[0].mxu0 %v1236
  %v1470 = vpop.f32.mrb[0].mxu0
  %v1471 = vadd.f32 0.0, %v1470
  %v1472 = vpop.f32.mrb[0].mxu0
  %v1473 = vpop.f32.mrb[0].mxu0
  %v1474 = vpop.f32.mrb[0].mxu0
  %1475 = vdwg.mxu0
  %1476 = vmatprep.subr.bf16.mxu0 0
  %1477 = vmatpush1.bf16.msra.mxu0 %v1388
  %1478 = vmatprep.subr.bf16.mxu0 0
  %1479 = vmatpush1.bf16.msra.mxu0 %v1389
  %1480 = vmatprep.subr.bf16.mxu0 0
  %1481 = vmatpush1.bf16.msra.mxu0 %v1390
  %1482 = vmatprep.subr.bf16.mxu0 0
  %1483 = vmatpush1.bf16.msra.mxu0 %v1391
  %1484 = vmatprep.subr.bf16.mxu0 0
  %1485 = vmatpush1.bf16.msra.mxu0 %v1392
  %1486 = vmatprep.subr.bf16.mxu0 0
  %1487 = vmatpush1.bf16.msra.mxu0 %v1393
  %1488 = vmatprep.subr.bf16.mxu0 0
  %1489 = vmatpush1.bf16.msra.mxu0 %v1394
  %1490 = vmatprep.subr.bf16.mxu0 0
  %1491 = vmatpush1.bf16.msra.mxu0 %v1395
  %1492 = vmatprep.subr.bf16.mxu0 0
  %1493 = vmatpush1.bf16.msra.mxu0 %v1396
  %1494 = vmatprep.subr.bf16.mxu0 0
  %1495 = vmatpush1.bf16.msra.mxu0 %v1397
  %1496 = vmatprep.subr.bf16.mxu0 0
  %1497 = vmatpush1.bf16.msra.mxu0 %v1398
  %1498 = vmatprep.subr.bf16.mxu0 0
  %1499 = vmatpush1.bf16.msra.mxu0 %v1399
  %1500 = vmatprep.subr.bf16.mxu0 0
  %1501 = vmatpush1.bf16.msra.mxu0 %v1400
  %1502 = vmatprep.subr.bf16.mxu0 0
  %1503 = vmatpush1.bf16.msra.mxu0 %v1401
  %1504 = vmatprep.subr.bf16.mxu0 0
  %1505 = vmatpush1.bf16.msra.mxu0 %v1402
  %1506 = vmatprep.subr.bf16.mxu0 0
  %1507 = vmatpush1.bf16.msra.mxu0 %v1403
  %1508 = vmatprep.mubr.bf16.mxu0 %v1239
  %1509 = vmatmul.mubr.bf16.gmra.mrb[0].mxu0 %v1238
  %v1510 = vpop.f32.mrb[0].mxu0
  %v1511 = vadd.f32 %v1471, %v1510
  %v1512 = vpop.f32.mrb[0].mxu0
  %v1513 = vpop.f32.mrb[0].mxu0
  %v1514 = vpop.f32.mrb[0].mxu0
  %1515 = vdwg.mxu0
  %1516 = vst [vmem:[%s3] sm:$0xff] %v1511
  // Predicated region
  $region14: #{amane_wavenet_forward.1} parent=0 // pred_check
    _
  $region15: #{amane_wavenet_forward.1} parent=0 // pred_check_branch
    %1518 = sbr.rel (0) target = $region17
  $region16: #{amane_wavenet_forward.1} parent=0 // pred_region
    _
  $region17: #{amane_wavenet_forward.1} parent=0 // pred_fallthru
    _
  // Predicated region
  $region18: #{amane_wavenet_forward.1} parent=0 // pred_check
    _
  $region19: #{amane_wavenet_forward.1} parent=0 // pred_check_branch
    %1520 = sbr.rel (0) target = $region21
  $region20: #{amane_wavenet_forward.1} parent=0 // pred_region
    _
  $region21: #{amane_wavenet_forward.1} parent=0 // pred_fallthru
    _

</llo_original>
